<compile_context>
chip_gen: v7x
topology: tpu7x:2x2x1
jax: 0.10.0
libtpu: 0.0.40
codegen_flags: <defaults>
</compile_context>

<pallas_src>
import functools

import jax
import jax.numpy as jnp
from jax.experimental import pallas as pl
from jax.experimental.pallas import tpu as pltpu


# --------------------------------- kernels -----------------------------------
def _one_hot_kernel(idx_ref, out_ref, *, tile_n):
    # idx_ref: (tile_m, 1) int32       out_ref: (tile_m, tile_n)
    col0 = pl.program_id(1) * tile_n
    col_ids = col0 + jax.lax.broadcasted_iota(jnp.int32, (1, tile_n), 1)
    out_ref[...] = (idx_ref[...] == col_ids).astype(out_ref.dtype)


def _one_hot_folded_kernel(idx_ref, out_ref, *, n_embd, fold):
    # idx_ref: (tile_m, fold) int32    out_ref: (tile_m, fold * n_embd)
    col_ids = jax.lax.broadcasted_iota(jnp.int32, (1, n_embd), 1)
    for s in range(fold):  # fold is a small static int
        out_ref[:, s * n_embd:(s + 1) * n_embd] = (
            idx_ref[:, s:s + 1] == col_ids).astype(out_ref.dtype)


# --------------------------------- wrapper ------------------------------------
_TARGET_BLOCK_BYTES = 4 << 20   # per output block (x2 for double buffering)


def _round_down(x, m):
    return (x // m) * m


def _cdiv(a, b):
    return -(-a // b)


def identity_embedding(idx, vocab_size, n_embd, *, dtype=jnp.float32):
    """Pallas equivalent of IdentityEmbedding.forward(idx).

    idx: integer array of arbitrary shape, values expected in [0, vocab_size).
    Returns: `dtype` array of shape idx.shape + (n_embd,) with 0/1 entries
    (exact even in bf16, so a narrower dtype may be passed by the consumer).
    """
    del vocab_size  # semantics fully captured by the (idx == e) comparison
    orig_shape = idx.shape
    flat = idx.reshape(-1).astype(jnp.int32)
    n = flat.shape[0]
    itemsize = jnp.dtype(dtype).itemsize
    row_mult = max(8, 32 // itemsize)   # sublane packing: f32 8, bf16 16, int8 32

    # ---- layout: fold tokens into 128-wide lane rows when n_embd < 128 -------
    fold = 0
    if 0 < n_embd < 128 and 128 % n_embd == 0 and n % (128 // n_embd) == 0:
        fold = 128 // n_embd
    if fold:
        n_rows, width, idx_cols = n // fold, fold * n_embd, fold
        idx2d = flat.reshape(n_rows, fold)
    else:
        n_rows, width, idx_cols = n, n_embd, 1
        idx2d = flat.reshape(n, 1)

    # ---- column tile: only split very wide n_embd so row blocks stay large ---
    min_rows = max(row_mult, 64)
    if (not fold and width % 128 == 0
            and width * itemsize * min_rows > _TARGET_BLOCK_BYTES):
        tile_n = max(128, _round_down(_TARGET_BLOCK_BYTES // (min_rows * itemsize), 128))
        tile_n = min(tile_n, width)
    else:
        tile_n = width

    # ---- row tile: ~4 MiB blocks, multiple of the sublane packing ------------
    rows_budget = max(row_mult, _TARGET_BLOCK_BYTES // (tile_n * itemsize))
    if n_rows <= row_mult:
        tile_m = n_rows                       # block == full array dim (allowed)
    else:
        tile_m = min(rows_budget, n_rows)
        if n_rows >= 2 * row_mult:            # keep >=2 row blocks (v7x: 2 TCs)
            tile_m = min(tile_m, _cdiv(n_rows, 2))
        tile_m = max(row_mult, _round_down(tile_m, row_mult))

    rows_grid = _cdiv(n_rows, tile_m)         # ragged last block is clipped
    cols_grid = _cdiv(width, tile_n)

    if fold:
        kernel = functools.partial(_one_hot_folded_kernel, n_embd=n_embd, fold=fold)
    else:
        kernel = functools.partial(_one_hot_kernel, tile_n=tile_n)

    # Actual VMEM need (double-buffered input + output blocks) plus slack;
    # well under v7x's 64 MiB-per-TC physical VMEM (and larger v5e/v6e VMEM).
    need = 2 * (tile_m * tile_n * itemsize + tile_m * idx_cols * 4)
    vmem_limit = int(min(24 << 20, max(8 << 20, need + (2 << 20))))

    out = pl.pallas_call(
        kernel,
        out_shape=jax.ShapeDtypeStruct((n_rows, width), dtype),
        grid=(rows_grid, cols_grid),
        in_specs=[pl.BlockSpec((tile_m, idx_cols), lambda i, j: (i, 0))],
        out_specs=pl.BlockSpec((tile_m, tile_n), lambda i, j: (i, j)),
        compiler_params=pltpu.CompilerParams(
            dimension_semantics=("parallel", "parallel"),
            vmem_limit_bytes=vmem_limit,
        ),
    )(idx2d)

    if fold:
        out = out.reshape(n, n_embd)          # free: row-major re-view
    return out.reshape(*orig_shape, n_embd)


# ----------------------- reference (plain JAX, mirrors PyTorch) ---------------
def _build_identity_weight(vocab_size, n_embd, dtype=jnp.float32):
    if n_embd == vocab_size:
        return jnp.eye(vocab_size, dtype=dtype)
    elif n_embd > vocab_size:
        w = jnp.zeros((vocab_size, n_embd), dtype=dtype)
        return w.at[:, :vocab_size].set(jnp.eye(vocab_size, dtype=dtype))
    else:
        w = jnp.zeros((vocab_size, n_embd), dtype=dtype)
        return w.at[:n_embd, :].set(jnp.eye(n_embd, dtype=dtype))


if __name__ == "__main__":
    key = jax.random.PRNGKey(0)
    k1, k2, k3 = jax.random.split(key, 3)

    # Case 1: n_embd > vocab_size (one-hot extended with zero columns), direct lane-dense path.
    batch, seq = 2, 8
    vocab_size, n_embd = 32, 128
    idx = jax.random.randint(k1, (batch, seq), 0, vocab_size, dtype=jnp.int32)
    out = jax.block_until_ready(identity_embedding(idx, vocab_size, n_embd))
    ref = _build_identity_weight(vocab_size, n_embd)[idx]
    assert out.shape == (batch, seq, n_embd)
    assert out.dtype == jnp.float32
    assert bool(jnp.array_equal(out, ref))

    # Case 2: n_embd < vocab_size and < 128 -> folded lane-dense path
    # (high token ids map to all-zero rows).
    vocab_size2, n_embd2 = 64, 32
    idx2 = jax.random.randint(k2, (batch, seq), 0, vocab_size2, dtype=jnp.int32)
    out2 = jax.block_until_ready(identity_embedding(idx2, vocab_size2, n_embd2))
    ref2 = _build_identity_weight(vocab_size2, n_embd2)[idx2]
    assert out2.shape == (batch, seq, n_embd2)
    assert bool(jnp.array_equal(out2, ref2))

    # Case 3: token count not a multiple of the row tile -> ragged last block
    # (no wrapper-side pad / post-slice copy).
    batch3, seq3 = 3, 5
    idx3 = jax.random.randint(k3, (batch3, seq3), 0, vocab_size, dtype=jnp.int32)
    out3 = jax.block_until_ready(identity_embedding(idx3, vocab_size, n_embd))
    ref3 = _build_identity_weight(vocab_size, n_embd)[idx3]
    assert out3.shape == (batch3, seq3, n_embd)
    assert bool(jnp.array_equal(out3, ref3))

    print("KERNEL_OK")
</pallas_src>

<mosaic_0001>
module attributes {stable_mosaic.version = 11 : i64} {
  func.func @_one_hot_kernel(%arg0: i32, %arg1: i32, %arg2: memref<8x1xi32, #tpu.memory_space<vmem>>, %arg3: memref<8x128xf32, #tpu.memory_space<vmem>>) attributes {dimension_semantics = [#tpu.dimension_semantics<parallel>, #tpu.dimension_semantics<parallel>], iteration_bounds = array<i64: 2, 1>, scalar_prefetch = 0 : i64, scratch_operands = 0 : i64, tpu.core_type = #tpu.core_type<tc>, window_params = [{transform_indices = @transform_0, window_bounds = array<i64: 8, 1>}, {transform_indices = @transform_1, window_bounds = array<i64: 8, 128>}]} {
    %c128_i32 = arith.constant 128 : i32
    %0 = arith.muli %arg1, %c128_i32 : i32
    %1 = tpu.iota {dimensions = array<i32: 1>} : vector<1x128xi32>
    %2 = vector.broadcast %0 : i32 to vector<1x128xi32>
    %3 = arith.addi %2, %1 : vector<1x128xi32>
    %c0 = arith.constant 0 : index
    %c0_0 = arith.constant 0 : index
    %4 = vector.load %arg2[%c0, %c0_0] : memref<8x1xi32, #tpu.memory_space<vmem>>, vector<8x1xi32>
    %5 = vector.broadcast %4 : vector<8x1xi32> to vector<8x128xi32>
    %6 = vector.broadcast %3 : vector<1x128xi32> to vector<8x128xi32>
    %7 = arith.cmpi eq, %5, %6 : vector<8x128xi32>
    %8 = arith.extui %7 : vector<8x128xi1> to vector<8x128xi32>
    %9 = arith.sitofp %8 : vector<8x128xi32> to vector<8x128xf32>
    %c0_1 = arith.constant 0 : index
    %c0_2 = arith.constant 0 : index
    %10 = vector.load %arg3[%c0_1, %c0_2] : memref<8x128xf32, #tpu.memory_space<vmem>>, vector<8x128xf32>
    tpu.vector_store %arg3[%c0_1, %c0_2], %9 {strides = array<i32>} : memref<8x128xf32, #tpu.memory_space<vmem>>, vector<8x128xf32>,
    return
  }
  func.func @transform_0(%arg0: i32, %arg1: i32) -> (i32, i32) {
    %c0_i32 = arith.constant 0 : i32
    %c0_i32_0 = arith.constant 0 : i32
    return %arg0, %c0_i32 : i32, i32
  }
  func.func @transform_1(%arg0: i32, %arg1: i32) -> (i32, i32) {
    %c0_i32 = arith.constant 0 : i32
    return %arg0, %arg1 : i32, i32
  }
}

</mosaic_0001>

<llo_original>
// kernel: tpu_custom_call.1
$region0: #{tpu_custom_call.1}
  #allocation0 [shape = 'u32[]', space=smem, size = 0x4, offset = 0x4, fixed_abs, tag = 'smem constant byte address 0x4 - core index']
  #allocation1 [shape = 'u32[144,128]{1,0:T(1,128)}', space=vmem, size = 0x12000, scoped, tag = 'internal scratch']
  %s0 = inlined_call_operand.vmem [shape: s32[16,1], index: 0, kind: input, shape index: {}]
  %s1 = inlined_call_operand.hbm [shape: f32[16,128], index: 1, kind: output, shape index: {}]
  %s2 = sld [smem:[#allocation0]]
  $region37: #{tpu_custom_call.1} parent=0
    _
  %s4 = ssub.s32 1, %s2
  %s5 = scalar_select 0, %s4, %s2
  $region1: #{tpu_custom_call.1} parent=0
    #allocation2 [shape = 'u8[8192]{0}', space=vmem, size = 0x2000, scoped, tag = 'output window, operand 0']
    #allocation3 [shape = 's32[2]{0}', space=sflag, size = 0x8, scoped, tag = 'scoped memory for tpu_custom_call.1']
    %6 = vsyncpa [#allocation3], 0
    %s7 = scalar_lea.sflag [#allocation3], 1
    %8 = vsyncpa %s7, 0
    loop: start=0, step=1, limit=4
    $region2: #{tpu_custom_call.1} parent=1 // loop_pre_header
      _
    $region3: #{tpu_custom_call.1} parent=1 // loop_header
      %s10 = sphi 0, %s14
      %p11 = scmp.ge.s32.totalorder %s10, 4
      %s17 = sphi 0, %s29
      %s18 = sphi 0, %s25
      %s19 = sphi 0, %s17
      %s20 = sphi 0, %s18
      %s21 = sphi 0, %s19
      %s22 = sphi 0, %s20
      %s32 = sphi 0, %s34
      %s35 = sphi 0, %s32
      %s36 = sphi 0, %s35
      %s52 = sphi 0, %s36
      %s60 = sphi 0, %s62
      %s63 = sphi 0, %s60
      %s64 = sphi 0, %s63
      %s80 = sphi 0, %s64
    $region4: #{tpu_custom_call.1} parent=1 // loop_header_branch
      %13 = sbr.rel (%p11) target = $region8
    $region5: #{tpu_custom_call.1} parent=1 // loop_body
      %s15 = ssub.s32 %s10, 1
      %s16 = ssub.s32 %s10, 2
      %s23 = sadd.s32 1, %s18
      %p24 = scmp.ge.s32.totalorder %s23, 1
      %s25 = scalar_select %p24, 0, %s23
      %s26 = sadd.s32 1, %s17
      %s27 = scalar_select %p24, %s26, %s17
      %p28 = scmp.ge.s32.totalorder %s27, 2
      %s29 = scalar_select %p28, 0, %s27
      %s30 = ssub.s32 %s17, %s29
      %p31 = scmp.eq.s32.totalorder %s30, 0
      %s33 = sadd.s32 %s32, 1
      %s34 = scalar_select %p31, %s32, %s33
      %p37 = pneg %p31
      %p38 = scmp.eq.s32.totalorder %s10, 1
      %p39 = por %p37, %p38
      %p40 = scmp.ne.s32.totalorder %s32, %s35
      %p41 = scmp.eq.s32.totalorder %s10, 0
      %p42 = por %p40, %p41
      %p43 = scmp.ne.s32.totalorder %s32, %s35
      %p44 = scmp.eq.s32.totalorder %s15, 1
      %p45 = por %p43, %p44
      %p46 = scmp.ne.s32.totalorder %s35, %s36
      %p47 = scmp.eq.s32.totalorder %s15, 0
      %p48 = por %p46, %p47
      %p49 = scmp.ne.s32.totalorder %s35, %s36
      %p50 = scmp.eq.s32.totalorder %s16, 1
      %p51 = por %p49, %p50
      %p53 = scmp.ne.s32.totalorder %s36, %s52
      %p54 = scmp.eq.s32.totalorder %s16, 0
      %p55 = por %p53, %p54
      %s56 = ssub.s32 %s17, %s29
      %s57 = ssub.s32 %s18, %s25
      %s58 = sor.u32 %s56, %s57
      %p59 = scmp.eq.s32.totalorder %s58, 0
      %s61 = sadd.s32 %s60, 1
      %s62 = scalar_select %p59, %s60, %s61
      %p65 = pneg %p59
      %p66 = scmp.eq.s32.totalorder %s10, 1
      %p67 = por %p65, %p66
      %p68 = scmp.ne.s32.totalorder %s60, %s63
      %p69 = scmp.eq.s32.totalorder %s10, 0
      %p70 = por %p68, %p69
      %p71 = scmp.ne.s32.totalorder %s60, %s63
      %p72 = scmp.eq.s32.totalorder %s15, 1
      %p73 = por %p71, %p72
      %p74 = scmp.ne.s32.totalorder %s63, %s64
      %p75 = scmp.eq.s32.totalorder %s15, 0
      %p76 = por %p74, %p75
      %p77 = scmp.ne.s32.totalorder %s63, %s64
      %p78 = scmp.eq.s32.totalorder %s16, 1
      %p79 = por %p77, %p78
      %p81 = scmp.ne.s32.totalorder %s64, %s80
      %p82 = scmp.eq.s32.totalorder %s16, 0
      %p83 = por %p81, %p82
      %p84 = scmp.le.s32.totalorder 1, %s10
      %p85 = scmp.lt.s32.totalorder %s10, 3
      %p86 = pnand %p84, %p85
      %p87 = pneg %p86
      // Predicated region
      $region9: #{tpu_custom_call.1} parent=5 // pred_check
        _
      $region10: #{tpu_custom_call.1} parent=5 // pred_check_branch
        %89 = sbr.rel (%p86) target = $region12
      $region11: #{tpu_custom_call.1} parent=5 // pred_region
        %s90 = ssub.s32 %s10, 1
      $region12: #{tpu_custom_call.1} parent=5 // pred_fallthru
        _
      %p91 = scmp.lt.s32.totalorder %s10, 2
      // Predicated region
      $region13: #{tpu_custom_call.1} parent=5 // pred_check
        %p92 = pneg %p91
      $region14: #{tpu_custom_call.1} parent=5 // pred_check_branch
        %94 = sbr.rel (%p92) target = $region16
      $region15: #{tpu_custom_call.1} parent=5 // pred_region
        // Predicated region
        $region17: #{tpu_custom_call.1} parent=15 // pred_check
          %p95 = pneg %p42
        $region18: #{tpu_custom_call.1} parent=15 // pred_check_branch
          %97 = sbr.rel (%p95) target = $region20
        $region19: #{tpu_custom_call.1} parent=15 // pred_region
          %p98 = scmp.lt.s32.totalorder %s17, 1
          %s99 = scalar_select %p98, %s17, 1
          %s100 = smul.addr %s99, 8
          %s101 = scalar_lea.vmem %s0, %s100
        $region20: #{tpu_custom_call.1} parent=15 // pred_fallthru
          _
      $region16: #{tpu_custom_call.1} parent=5 // pred_fallthru
        _
      %p102 = scmp.le.s32.totalorder 1, %s10
      %p103 = scmp.lt.s32.totalorder %s10, 3
      %p104 = pnand %p102, %p103
      %p105 = pneg %p104
      // Predicated region
      $region21: #{tpu_custom_call.1} parent=5 // pred_check
        _
      $region22: #{tpu_custom_call.1} parent=5 // pred_check_branch
        %107 = sbr.rel (%p104) target = $region24
      $region23: #{tpu_custom_call.1} parent=5 // pred_region
        %s108 = ssub.s32 %s10, 1
        %p109 = scmp.lt.s32.totalorder %s19, 1
        %s110 = scalar_select %p109, %s19, 1
        %s111 = smul.addr %s110, 8
        %s112 = scalar_lea.vmem %s0, %s111
        %p113 = pneg %p48
        %p114 = pneg %p45
        %p115 = pneg %p76
        %p116 = pneg %p73
        %s117 = sand.u32 %s63, 1
        %s118 = scalar_lea.sflag [#allocation3], %s117
        %s119 = sand.u32 %s63, 1
        %s120 = smul.addr %s119, 8
        %s121 = scalar_lea.vmem [#allocation2], %s120
        %p122 = scmp.lt.s32.totalorder %s19, 1
        %s123 = scalar_select %p122, %s19, 1
        %s124 = smul.addr %s123, 8
        %s125 = scalar_lea.vmem %s0, %s124
        %s126 = smul.u32 %s20, 128
        %v127 = vlaneseq
        %v128 = vand.u32 %v127, 127
        %v129 = vstv %s126
        %v130 = vadd.s32 %v129, %v128
        %v131 = vld [vmem:[%s125] sm:$0xff]
        %132 = vset.pattern.permute.xlu0 0
        %133 = vperm.xlu0 %132, %v131
        %v134 = vpop.permute.xlu0 %133
        %vm135 = vcmp.eq.s32.totalorder %v134, %v130
        %v136 = vsel %vm135, 1, 0
        %v137 = vcvt.s32.f32 %v136
        %138 = vst [vmem:[%s121] sm:$0xff] %v137
        %s139 = sand.u32 %s63, 1
        %s140 = scalar_lea.sflag [#allocation3], %s139
        %s141 = sand.u32 %s63, 1
        %s142 = smul.addr %s141, 8
        %s143 = scalar_lea.vmem [#allocation2], %s142
        // Predicated region
        $region25: #{tpu_custom_call.1} parent=23 // pred_check
          %p144 = pneg %p73
        $region26: #{tpu_custom_call.1} parent=23 // pred_check_branch
          %146 = sbr.rel (%p144) target = $region28
        $region27: #{tpu_custom_call.1} parent=23 // pred_region
          %s148 = ssub.s32 128, 128
          %149 = vsyncadd %s140, %s148
          %s150 = sadd.s32 %s20, %s19
          %s151 = smul.addr %s150, 128
          %s152 = scalar_lea.hbm %s1, %s151
          %s154 = sshll.u32 %s143, 4
          %s155 = int_to_ptr.vmem [resolvable:$true] %s154
          %157 = dma.vmem_to_hbm [thread:$0]  %s155, 128, %s152, %s140
        $region28: #{tpu_custom_call.1} parent=23 // pred_fallthru
          _
      $region24: #{tpu_custom_call.1} parent=5 // pred_fallthru
        _
      %p158 = scmp.le.s32.totalorder 2, %s10
      // Predicated region
      $region29: #{tpu_custom_call.1} parent=5 // pred_check
        %p159 = pneg %p158
      $region30: #{tpu_custom_call.1} parent=5 // pred_check_branch
        %161 = sbr.rel (%p159) target = $region32
      $region31: #{tpu_custom_call.1} parent=5 // pred_region
        %s162 = ssub.s32 %s10, 2
        // Predicated region
        $region33: #{tpu_custom_call.1} parent=31 // pred_check
          %p163 = pneg %p79
        $region34: #{tpu_custom_call.1} parent=31 // pred_check_branch
          %165 = sbr.rel (%p163) target = $region36
        $region35: #{tpu_custom_call.1} parent=31 // pred_region
          %s166 = sand.u32 %s64, 1
          %s167 = scalar_lea.sflag [#allocation3], %s166
          %s168 = sand.u32 %s64, 1
          %s169 = smul.addr %s168, 8
          %s170 = scalar_lea.vmem [#allocation2], %s169
          %171 = dma.done %s167, 128
        $region36: #{tpu_custom_call.1} parent=31 // pred_fallthru
          _
      $region32: #{tpu_custom_call.1} parent=5 // pred_fallthru
        _
    $region6: #{tpu_custom_call.1} parent=1 // loop_footer
      %s14 = sadd.s32 1, %s10
    $region7: #{tpu_custom_call.1} parent=1 // loop_footer_branch
      %9 = sbr.rel target = $region3
    $region8: #{tpu_custom_call.1} parent=1 // loop_exit
      _
    %172 = vsyncpa [#allocation3], 1
    %s173 = scalar_lea.sflag [#allocation3], 1
    %174 = vsyncpa %s173, 1

</llo_original>
